<compile_context>
chip_gen: v5e
topology: v5e:2x2
jax: 0.10.0
libtpu: 0.0.40
codegen_flags: <defaults>
</compile_context>

<pallas_src>
import functools

import jax
import jax.numpy as jnp
from jax.experimental import pallas as pl
from jax.experimental.pallas import tpu as pltpu


def _round_up(n, m):
    return ((n + m - 1) // m) * m


def _pad2d(a, rows, cols, dtype):
    a = a.astype(dtype)
    return jnp.pad(a, ((0, rows - a.shape[0]), (0, cols - a.shape[1])))


def _physical_vmem_bytes():
    """Best-effort physical VMEM query; falls back to the v7x-safe 64 MiB."""
    try:
        info = pltpu.get_tpu_info()
        for attr in ("vmem_capacity_bytes", "vmem_bytes", "vmem_size_bytes"):
            v = getattr(info, attr, None)
            if v:
                return int(v)
    except Exception:
        pass
    return 64 * 1024 * 1024


def _single_buffer_mode():
    """pl.Buffered(1) if available (constant-index operands need only one buffer)."""
    try:
        return pl.Buffered(1)
    except TypeError:
        try:
            return pl.Buffered(buffer_count=1)
        except Exception:
            return None
    except Exception:
        return None


def _make_fused_mlp_kernel(num_hidden):
    """Kernel: x_ref, (w,b)*num_hidden, (w_out,b_out), out_ref, feat_ref."""

    def kernel(*refs):
        x_ref = refs[0]
        wb_refs = refs[1 : 1 + 2 * (num_hidden + 1)]
        out_ref, feat_ref = refs[1 + 2 * (num_hidden + 1) :]

        act = x_ref[...]  # stays vreg/VMEM-resident between layers (no HBM round trips)

        if num_hidden == 0:
            # PyTorch Identity path: feat is exactly x (f32, untouched).
            feat_ref[...] = act.astype(feat_ref.dtype)
            act = act.astype(jnp.bfloat16)
        else:
            for l in range(num_hidden):
                w_ref = wb_refs[2 * l]
                b_ref = wb_refs[2 * l + 1]
                acc = jnp.dot(act, w_ref[...], preferred_element_type=jnp.float32)
                acc = acc + b_ref[...]          # (TB, D) + (1, D) broadcast, f32 on VPU
                acc = jnp.maximum(acc, 0.0)     # ReLU fused on the accumulator
                act = acc.astype(jnp.bfloat16)  # feed next MXU layer in bf16
                # TODO(synk): dropout omitted (inference-mode identity); a training
                # path would need pltpu.prng_seed / pltpu.prng_random_bits masking.
            # feat is exactly what fc_out consumes; bf16 store is an exact cast.
            feat_ref[...] = act.astype(feat_ref.dtype)

        w_ref = wb_refs[2 * num_hidden]
        b_ref = wb_refs[2 * num_hidden + 1]
        out = jnp.dot(act, w_ref[...], preferred_element_type=jnp.float32) + b_ref[...]
        out_ref[...] = out.astype(out_ref.dtype)

    return kernel


def init_fc_classifier_params(key, input_dim, layers, output_dim):
    """Deterministic init mirroring nn.Linear default (U[-1/sqrt(fan_in), 1/sqrt(fan_in)]).

    Weights stored (D_in, D_out) (transpose of PyTorch's (out, in)); biases (1, D_out).
    """
    params = {"hidden": [], "fc_out": None}
    dims_in = input_dim
    for h in layers:
        key, kw, kb = jax.random.split(key, 3)
        bound = 1.0 / jnp.sqrt(dims_in)
        w = jax.random.uniform(kw, (dims_in, h), jnp.float32, -bound, bound)
        b = jax.random.uniform(kb, (1, h), jnp.float32, -bound, bound)
        params["hidden"].append((w, b))
        dims_in = h
    last_dim = layers[-1] if len(layers) > 0 else input_dim
    key, kw, kb = jax.random.split(key, 3)
    bound = 1.0 / jnp.sqrt(last_dim)
    w_out = jax.random.uniform(kw, (last_dim, output_dim), jnp.float32, -bound, bound)
    b_out = jax.random.uniform(kb, (1, output_dim), jnp.float32, -bound, bound)
    params["fc_out"] = (w_out, b_out)
    return params


@functools.partial(jax.jit, static_argnames=("single_buffer_weights",))
def _fc_classifier_forward_impl(params, x, *, single_buffer_weights=True):
    B, input_dim = x.shape
    hidden = params["hidden"]
    num_hidden = len(hidden)

    dims = [int(input_dim)] + [int(w.shape[1]) for (w, _) in hidden]  # logical widths
    feat_dim = dims[-1]
    output_dim = int(params["fc_out"][0].shape[1])

    # Padded (lane-dense) sizes: features to multiples of 128.
    dims_pad = [_round_up(d, 128) for d in dims]
    out_dim_pad = _round_up(output_dim, 128)

    # Dtypes: bf16 activations when there is at least one hidden layer; exact f32
    # passthrough of x -> feat on the Identity (num_hidden == 0) path.
    x_dtype = jnp.bfloat16 if num_hidden > 0 else jnp.float32
    feat_dtype = jnp.bfloat16 if num_hidden > 0 else jnp.float32
    x_itemsize = 2 if num_hidden > 0 else 4
    feat_itemsize = 2 if num_hidden > 0 else 4

    # Resident (padded) weight/bias bytes.
    weight_bytes = 0
    for l in range(num_hidden):
        weight_bytes += dims_pad[l] * dims_pad[l + 1] * 2 + dims_pad[l + 1] * 4
    weight_bytes += dims_pad[-1] * out_dim_pad * 2 + out_dim_pad * 4
    wb_bufs = 1 if single_buffer_weights else 2

    phys_vmem = _physical_vmem_bytes()
    cap_bytes = int(phys_vmem * 0.85)  # headroom for Mosaic scratch / semaphores

    def budget(tb):
        x_tile = tb * dims_pad[0] * x_itemsize
        out_tile = tb * out_dim_pad * 4
        feat_tile = tb * dims_pad[-1] * feat_itemsize
        acc = tb * max(dims_pad + [out_dim_pad]) * 4  # f32 layer accumulator
        return (weight_bytes * wb_bufs
                + 2 * (x_tile + out_tile + feat_tile)  # double-buffered streams
                + 2 * acc
                + 2 * 1024 * 1024)                      # misc headroom

    # Batch tile: up to 512 rows (v5e/v6e, fewer grid steps), but at most ceil(B/2)
    # when B >= 32 so v7x's second TensorCore gets work; shrink if over VMEM cap.
    tb_cap = 512
    if B >= 32:
        tb_cap = min(tb_cap, max(16, _round_up(-(-B // 2), 16)))
    tb = min(_round_up(B, 16), tb_cap)
    while tb > 16 and budget(tb) > cap_bytes:
        tb = max(16, _round_up(tb // 2, 16))
    # TODO(synk): if weight_bytes * wb_bufs alone exceeds the cap (huge MLPs on
    # v7x's 64 MiB/TC), a feature-dim grid axis / pltpu.emit_pipeline weight
    # streaming path would be needed; not implemented for classifier-sized MLPs.

    b_pad = _round_up(B, tb)
    num_b_tiles = b_pad // tb

    vmem_limit = int(min(cap_bytes, max(budget(tb), 32 * 1024 * 1024)))

    weight_mode = _single_buffer_mode() if single_buffer_weights else None

    def const_spec(shape):
        if weight_mode is not None:
            return pl.BlockSpec(shape, lambda i: (0, 0), pipeline_mode=weight_mode)
        return pl.BlockSpec(shape, lambda i: (0, 0))

    # Pad + cast operands (zero padding is exact: zero rows/cols, zero bias, ReLU(0)=0).
    x_pad = _pad2d(x, b_pad, dims_pad[0], x_dtype)
    flat_inputs = [x_pad]
    in_specs = [pl.BlockSpec((tb, dims_pad[0]), lambda i: (i, 0))]
    for l in range(num_hidden):
        w, b = hidden[l]
        flat_inputs.append(_pad2d(w, dims_pad[l], dims_pad[l + 1], jnp.bfloat16))
        flat_inputs.append(_pad2d(b, 1, dims_pad[l + 1], jnp.float32))
        in_specs.append(const_spec((dims_pad[l], dims_pad[l + 1])))
        in_specs.append(const_spec((1, dims_pad[l + 1])))
    w_out, b_out = params["fc_out"]
    flat_inputs.append(_pad2d(w_out, dims_pad[-1], out_dim_pad, jnp.bfloat16))
    flat_inputs.append(_pad2d(b_out, 1, out_dim_pad, jnp.float32))
    in_specs.append(const_spec((dims_pad[-1], out_dim_pad)))
    in_specs.append(const_spec((1, out_dim_pad)))

    out_specs = (
        pl.BlockSpec((tb, out_dim_pad), lambda i: (i, 0)),
        pl.BlockSpec((tb, dims_pad[-1]), lambda i: (i, 0)),
    )
    out_shape = (
        jax.ShapeDtypeStruct((b_pad, out_dim_pad), jnp.float32),
        jax.ShapeDtypeStruct((b_pad, dims_pad[-1]), feat_dtype),
    )

    # Advisory cost estimate for XLA's scheduler.
    flops = 0
    for l in range(num_hidden):
        flops += 2 * b_pad * dims_pad[l] * dims_pad[l + 1]
    flops += 2 * b_pad * dims_pad[-1] * out_dim_pad
    bytes_accessed = (sum(int(a.size) * a.dtype.itemsize for a in flat_inputs)
                      + b_pad * out_dim_pad * 4
                      + b_pad * dims_pad[-1] * feat_itemsize)
    cost = pl.CostEstimate(flops=flops, transcendentals=0,
                           bytes_accessed=bytes_accessed)

    out_pad_arr, feat_pad_arr = pl.pallas_call(
        _make_fused_mlp_kernel(num_hidden),
        out_shape=out_shape,
        grid=(num_b_tiles,),
        in_specs=in_specs,
        out_specs=out_specs,
        compiler_params=pltpu.CompilerParams(
            dimension_semantics=("parallel",),   # batch tiles split across TCs on v7x
            vmem_limit_bytes=vmem_limit,
        ),
        cost_estimate=cost,
    )(*flat_inputs)

    # Un-pad / upcast only when actually needed (avoid no-op HBM round trips).
    out = out_pad_arr
    if b_pad != B or out_dim_pad != output_dim:
        out = out[:B, :output_dim]
    feat = feat_pad_arr
    if b_pad != B or dims_pad[-1] != feat_dim:
        feat = feat[:B, :feat_dim]
    if feat.dtype != jnp.float32:
        feat = feat.astype(jnp.float32)  # fuses with the slice above under jit
    return out, feat


def fc_classifier_forward(params, x):
    """Forward pass of FcClassifier: returns (out, feat) — one fused Pallas kernel.

    Tries single-buffered resident weights first (halves weight VMEM); falls back
    to default double-buffering if pl.Buffered(1) is not supported by the backend.
    """
    try:
        res = _fc_classifier_forward_impl(params, x, single_buffer_weights=True)
        jax.block_until_ready(res)
        return res
    except Exception:
        res = _fc_classifier_forward_impl(params, x, single_buffer_weights=False)
        jax.block_until_ready(res)
        return res


def _ref_forward(params, x):
    """Plain-JAX reference with the same bf16-operand / f32-accumulate semantics."""
    hidden = params["hidden"]
    if len(hidden) == 0:
        feat = x.astype(jnp.float32)
        act_bf16 = x.astype(jnp.bfloat16)
    else:
        act_bf16 = x.astype(jnp.bfloat16)
        for (w, b) in hidden:
            acc = jnp.dot(act_bf16, w.astype(jnp.bfloat16),
                          preferred_element_type=jnp.float32) + b
            act_bf16 = jnp.maximum(acc, 0.0).astype(jnp.bfloat16)
        feat = act_bf16.astype(jnp.float32)
    w_out, b_out = params["fc_out"]
    out = jnp.dot(act_bf16, w_out.astype(jnp.bfloat16),
                  preferred_element_type=jnp.float32) + b_out
    return out, feat


def _run_case(key, B, input_dim, layers, output_dim):
    key, kx = jax.random.split(key)
    x = jax.random.normal(kx, (B, input_dim), jnp.float32)
    params = init_fc_classifier_params(key, input_dim, list(layers), output_dim)

    out, feat = fc_classifier_forward(params, x)
    jax.block_until_ready((out, feat))

    feat_dim = layers[-1] if len(layers) > 0 else input_dim
    assert out.shape == (B, output_dim)
    assert feat.shape == (B, feat_dim)

    ref_out, ref_feat = _ref_forward(params, x)
    assert jnp.allclose(out, ref_out, atol=1e-3, rtol=1e-3), "out mismatch vs reference"
    assert jnp.allclose(feat, ref_feat, atol=1e-3, rtol=1e-3), "feat mismatch vs reference"


if __name__ == "__main__":
    key = jax.random.PRNGKey(0)

    # FcClassifier(input_dim=32, layers=[64, 32], output_dim=8), batch=8.
    _run_case(key, B=8, input_dim=32, layers=[64, 32], output_dim=8)

    # Multi-tile batch (exercises the parallel batch grid + padding path).
    key, k2 = jax.random.split(key)
    _run_case(k2, B=40, input_dim=32, layers=[64, 32], output_dim=8)

    # Identity path (len(layers) == 0): feat must be x, untouched, in f32.
    key, k3 = jax.random.split(key)
    _run_case(k3, B=8, input_dim=32, layers=[], output_dim=8)

    print("KERNEL_OK")
</pallas_src>

<mosaic_0001>
module attributes {stable_mosaic.version = 11 : i64} {
  func.func @kernel(%arg0: i32, %arg1: memref<16x128xbf16, #tpu.memory_space<vmem>>, %arg2: memref<128x128xbf16, #tpu.memory_space<vmem>>, %arg3: memref<1x128xf32, #tpu.memory_space<vmem>>, %arg4: memref<128x128xbf16, #tpu.memory_space<vmem>>, %arg5: memref<1x128xf32, #tpu.memory_space<vmem>>, %arg6: memref<128x128xbf16, #tpu.memory_space<vmem>>, %arg7: memref<1x128xf32, #tpu.memory_space<vmem>>, %arg8: memref<16x128xf32, #tpu.memory_space<vmem>>, %arg9: memref<16x128xbf16, #tpu.memory_space<vmem>>) attributes {dimension_semantics = [#tpu.dimension_semantics<parallel>], iteration_bounds = array<i64: 1>, scalar_prefetch = 0 : i64, scratch_operands = 0 : i64, tpu.core_type = #tpu.core_type<tc>, window_params = [{transform_indices = @transform_0, window_bounds = array<i64: 16, 128>}, {pipeline_mode = #tpu.pipeline_mode<synchronous>, transform_indices = @transform_1, window_bounds = array<i64: 128, 128>}, {pipeline_mode = #tpu.pipeline_mode<synchronous>, transform_indices = @transform_2, window_bounds = array<i64: 1, 128>}, {pipeline_mode = #tpu.pipeline_mode<synchronous>, transform_indices = @transform_3, window_bounds = array<i64: 128, 128>}, {pipeline_mode = #tpu.pipeline_mode<synchronous>, transform_indices = @transform_4, window_bounds = array<i64: 1, 128>}, {pipeline_mode = #tpu.pipeline_mode<synchronous>, transform_indices = @transform_5, window_bounds = array<i64: 128, 128>}, {pipeline_mode = #tpu.pipeline_mode<synchronous>, transform_indices = @transform_6, window_bounds = array<i64: 1, 128>}, {transform_indices = @transform_7, window_bounds = array<i64: 16, 128>}, {transform_indices = @transform_8, window_bounds = array<i64: 16, 128>}]} {
    %c0 = arith.constant 0 : index
    %c0_0 = arith.constant 0 : index
    %0 = vector.load %arg1[%c0, %c0_0] : memref<16x128xbf16, #tpu.memory_space<vmem>>, vector<16x128xbf16>
    %c0_1 = arith.constant 0 : index
    %c0_2 = arith.constant 0 : index
    %1 = vector.load %arg2[%c0_1, %c0_2] : memref<128x128xbf16, #tpu.memory_space<vmem>>, vector<128x128xbf16>
    %cst = arith.constant dense<0.000000e+00> : vector<16x128xf32>
    %2 = tpu.matmul %0, %1, %cst {dimension_numbers = #tpu.dot_dimension_numbers<[1], [0], [0], [1], [0, 0, 1, 1], [], []>} : vector<16x128xbf16>, vector<128x128xbf16>, vector<16x128xf32> -> vector<16x128xf32>
    %c0_3 = arith.constant 0 : index
    %c0_4 = arith.constant 0 : index
    %3 = vector.load %arg3[%c0_3, %c0_4] : memref<1x128xf32, #tpu.memory_space<vmem>>, vector<1x128xf32>
    %4 = vector.broadcast %3 : vector<1x128xf32> to vector<16x128xf32>
    %5 = arith.addf %2, %4 : vector<16x128xf32>
    %cst_5 = arith.constant 0.000000e+00 : f32
    %6 = vector.broadcast %cst_5 : f32 to vector<16x128xf32>
    %7 = arith.maximumf %5, %6 : vector<16x128xf32>
    %8 = arith.truncf %7 : vector<16x128xf32> to vector<16x128xbf16>
    %c0_6 = arith.constant 0 : index
    %c0_7 = arith.constant 0 : index
    %9 = vector.load %arg4[%c0_6, %c0_7] : memref<128x128xbf16, #tpu.memory_space<vmem>>, vector<128x128xbf16>
    %cst_8 = arith.constant dense<0.000000e+00> : vector<16x128xf32>
    %10 = tpu.matmul %8, %9, %cst_8 {dimension_numbers = #tpu.dot_dimension_numbers<[1], [0], [0], [1], [0, 0, 1, 1], [], []>} : vector<16x128xbf16>, vector<128x128xbf16>, vector<16x128xf32> -> vector<16x128xf32>
    %c0_9 = arith.constant 0 : index
    %c0_10 = arith.constant 0 : index
    %11 = vector.load %arg5[%c0_9, %c0_10] : memref<1x128xf32, #tpu.memory_space<vmem>>, vector<1x128xf32>
    %12 = vector.broadcast %11 : vector<1x128xf32> to vector<16x128xf32>
    %13 = arith.addf %10, %12 : vector<16x128xf32>
    %cst_11 = arith.constant 0.000000e+00 : f32
    %14 = vector.broadcast %cst_11 : f32 to vector<16x128xf32>
    %15 = arith.maximumf %13, %14 : vector<16x128xf32>
    %16 = arith.truncf %15 : vector<16x128xf32> to vector<16x128xbf16>
    %c0_12 = arith.constant 0 : index
    %c0_13 = arith.constant 0 : index
    %17 = vector.load %arg9[%c0_12, %c0_13] : memref<16x128xbf16, #tpu.memory_space<vmem>>, vector<16x128xbf16>
    tpu.vector_store %arg9[%c0_12, %c0_13], %16 {strides = array<i32>} : memref<16x128xbf16, #tpu.memory_space<vmem>>, vector<16x128xbf16>,
    %c0_14 = arith.constant 0 : index
    %c0_15 = arith.constant 0 : index
    %18 = vector.load %arg6[%c0_14, %c0_15] : memref<128x128xbf16, #tpu.memory_space<vmem>>, vector<128x128xbf16>
    %cst_16 = arith.constant dense<0.000000e+00> : vector<16x128xf32>
    %19 = tpu.matmul %16, %18, %cst_16 {dimension_numbers = #tpu.dot_dimension_numbers<[1], [0], [0], [1], [0, 0, 1, 1], [], []>} : vector<16x128xbf16>, vector<128x128xbf16>, vector<16x128xf32> -> vector<16x128xf32>
    %c0_17 = arith.constant 0 : index
    %c0_18 = arith.constant 0 : index
    %20 = vector.load %arg7[%c0_17, %c0_18] : memref<1x128xf32, #tpu.memory_space<vmem>>, vector<1x128xf32>
    %21 = vector.broadcast %20 : vector<1x128xf32> to vector<16x128xf32>
    %22 = arith.addf %19, %21 : vector<16x128xf32>
    %c0_19 = arith.constant 0 : index
    %c0_20 = arith.constant 0 : index
    %23 = vector.load %arg8[%c0_19, %c0_20] : memref<16x128xf32, #tpu.memory_space<vmem>>, vector<16x128xf32>
    tpu.vector_store %arg8[%c0_19, %c0_20], %22 {strides = array<i32>} : memref<16x128xf32, #tpu.memory_space<vmem>>, vector<16x128xf32>,
    return
  }
  func.func @transform_0(%arg0: i32) -> (i32, i32) {
    %c0_i32 = arith.constant 0 : i32
    %c0_i32_0 = arith.constant 0 : i32
    return %arg0, %c0_i32 : i32, i32
  }
  func.func @transform_1(%arg0: i32) -> (i32, i32) {
    %c0_i32 = arith.constant 0 : i32
    %c0_i32_0 = arith.constant 0 : i32
    %c0_i32_1 = arith.constant 0 : i32
    return %c0_i32, %c0_i32_0 : i32, i32
  }
  func.func @transform_2(%arg0: i32) -> (i32, i32) {
    %c0_i32 = arith.constant 0 : i32
    %c0_i32_0 = arith.constant 0 : i32
    %c0_i32_1 = arith.constant 0 : i32
    return %c0_i32, %c0_i32_0 : i32, i32
  }
  func.func @transform_3(%arg0: i32) -> (i32, i32) {
    %c0_i32 = arith.constant 0 : i32
    %c0_i32_0 = arith.constant 0 : i32
    %c0_i32_1 = arith.constant 0 : i32
    return %c0_i32, %c0_i32_0 : i32, i32
  }
  func.func @transform_4(%arg0: i32) -> (i32, i32) {
    %c0_i32 = arith.constant 0 : i32
    %c0_i32_0 = arith.constant 0 : i32
    %c0_i32_1 = arith.constant 0 : i32
    return %c0_i32, %c0_i32_0 : i32, i32
  }
  func.func @transform_5(%arg0: i32) -> (i32, i32) {
    %c0_i32 = arith.constant 0 : i32
    %c0_i32_0 = arith.constant 0 : i32
    %c0_i32_1 = arith.constant 0 : i32
    return %c0_i32, %c0_i32_0 : i32, i32
  }
  func.func @transform_6(%arg0: i32) -> (i32, i32) {
    %c0_i32 = arith.constant 0 : i32
    %c0_i32_0 = arith.constant 0 : i32
    %c0_i32_1 = arith.constant 0 : i32
    return %c0_i32, %c0_i32_0 : i32, i32
  }
  func.func @transform_7(%arg0: i32) -> (i32, i32) {
    %c0_i32 = arith.constant 0 : i32
    %c0_i32_0 = arith.constant 0 : i32
    return %arg0, %c0_i32 : i32, i32
  }
  func.func @transform_8(%arg0: i32) -> (i32, i32) {
    %c0_i32 = arith.constant 0 : i32
    %c0_i32_0 = arith.constant 0 : i32
    return %arg0, %c0_i32 : i32, i32
  }
}

module attributes {stable_mosaic.version = 11 : i64} {
  func.func @kernel(%arg0: i32, %arg1: memref<16x128xbf16, #tpu.memory_space<vmem>>, %arg2: memref<128x128xbf16, #tpu.memory_space<vmem>>, %arg3: memref<1x128xf32, #tpu.memory_space<vmem>>, %arg4: memref<128x128xbf16, #tpu.memory_space<vmem>>, %arg5: memref<1x128xf32, #tpu.memory_space<vmem>>, %arg6: memref<128x128xbf16, #tpu.memory_space<vmem>>, %arg7: memref<1x128xf32, #tpu.memory_space<vmem>>, %arg8: memref<16x128xf32, #tpu.memory_space<vmem>>, %arg9: memref<16x128xbf16, #tpu.memory_space<vmem>>) attributes {dimension_semantics = [#tpu.dimension_semantics<parallel>], iteration_bounds = array<i64: 1>, scalar_prefetch = 0 : i64, scratch_operands = 0 : i64, tpu.core_type = #tpu.core_type<tc>, window_params = [{transform_indices = @transform_0, window_bounds = array<i64: 16, 128>}, {pipeline_mode = #tpu.pipeline_mode<synchronous>, transform_indices = @transform_1, window_bounds = array<i64: 128, 128>}, {pipeline_mode = #tpu.pipeline_mode<synchronous>, transform_indices = @transform_2, window_bounds = array<i64: 1, 128>}, {pipeline_mode = #tpu.pipeline_mode<synchronous>, transform_indices = @transform_3, window_bounds = array<i64: 128, 128>}, {pipeline_mode = #tpu.pipeline_mode<synchronous>, transform_indices = @transform_4, window_bounds = array<i64: 1, 128>}, {pipeline_mode = #tpu.pipeline_mode<synchronous>, transform_indices = @transform_5, window_bounds = array<i64: 128, 128>}, {pipeline_mode = #tpu.pipeline_mode<synchronous>, transform_indices = @transform_6, window_bounds = array<i64: 1, 128>}, {transform_indices = @transform_7, window_bounds = array<i64: 16, 128>}, {transform_indices = @transform_8, window_bounds = array<i64: 16, 128>}]} {
    %c0 = arith.constant 0 : index
    %c0_0 = arith.constant 0 : index
    %0 = vector.load %arg1[%c0, %c0_0] : memref<16x128xbf16, #tpu.memory_space<vmem>>, vector<16x128xbf16>
    %c0_1 = arith.constant 0 : index
    %c0_2 = arith.constant 0 : index
    %1 = vector.load %arg2[%c0_1, %c0_2] : memref<128x128xbf16, #tpu.memory_space<vmem>>, vector<128x128xbf16>
    %cst = arith.constant dense<0.000000e+00> : vector<16x128xf32>
    %2 = tpu.matmul %0, %1, %cst {dimension_numbers = #tpu.dot_dimension_numbers<[1], [0], [0], [1], [0, 0, 1, 1], [], []>} : vector<16x128xbf16>, vector<128x128xbf16>, vector<16x128xf32> -> vector<16x128xf32>
    %c0_3 = arith.constant 0 : index
    %c0_4 = arith.constant 0 : index
    %3 = vector.load %arg3[%c0_3, %c0_4] : memref<1x128xf32, #tpu.memory_space<vmem>>, vector<1x128xf32>
    %4 = vector.broadcast %3 : vector<1x128xf32> to vector<16x128xf32>
    %5 = arith.addf %2, %4 : vector<16x128xf32>
    %cst_5 = arith.constant 0.000000e+00 : f32
    %6 = vector.broadcast %cst_5 : f32 to vector<16x128xf32>
    %7 = arith.maximumf %5, %6 : vector<16x128xf32>
    %8 = arith.truncf %7 : vector<16x128xf32> to vector<16x128xbf16>
    %c0_6 = arith.constant 0 : index
    %c0_7 = arith.constant 0 : index
    %9 = vector.load %arg4[%c0_6, %c0_7] : memref<128x128xbf16, #tpu.memory_space<vmem>>, vector<128x128xbf16>
    %cst_8 = arith.constant dense<0.000000e+00> : vector<16x128xf32>
    %10 = tpu.matmul %8, %9, %cst_8 {dimension_numbers = #tpu.dot_dimension_numbers<[1], [0], [0], [1], [0, 0, 1, 1], [], []>} : vector<16x128xbf16>, vector<128x128xbf16>, vector<16x128xf32> -> vector<16x128xf32>
    %c0_9 = arith.constant 0 : index
    %c0_10 = arith.constant 0 : index
    %11 = vector.load %arg5[%c0_9, %c0_10] : memref<1x128xf32, #tpu.memory_space<vmem>>, vector<1x128xf32>
    %12 = vector.broadcast %11 : vector<1x128xf32> to vector<16x128xf32>
    %13 = arith.addf %10, %12 : vector<16x128xf32>
    %cst_11 = arith.constant 0.000000e+00 : f32
    %14 = vector.broadcast %cst_11 : f32 to vector<16x128xf32>
    %15 = arith.maximumf %13, %14 : vector<16x128xf32>
    %16 = arith.truncf %15 : vector<16x128xf32> to vector<16x128xbf16>
    %c0_12 = arith.constant 0 : index
    %c0_13 = arith.constant 0 : index
    %17 = vector.load %arg9[%c0_12, %c0_13] : memref<16x128xbf16, #tpu.memory_space<vmem>>, vector<16x128xbf16>
    tpu.vector_store %arg9[%c0_12, %c0_13], %16 {strides = array<i32>} : memref<16x128xbf16, #tpu.memory_space<vmem>>, vector<16x128xbf16>,
    %c0_14 = arith.constant 0 : index
    %c0_15 = arith.constant 0 : index
    %18 = vector.load %arg6[%c0_14, %c0_15] : memref<128x128xbf16, #tpu.memory_space<vmem>>, vector<128x128xbf16>
    %cst_16 = arith.constant dense<0.000000e+00> : vector<16x128xf32>
    %19 = tpu.matmul %16, %18, %cst_16 {dimension_numbers = #tpu.dot_dimension_numbers<[1], [0], [0], [1], [0, 0, 1, 1], [], []>} : vector<16x128xbf16>, vector<128x128xbf16>, vector<16x128xf32> -> vector<16x128xf32>
    %c0_17 = arith.constant 0 : index
    %c0_18 = arith.constant 0 : index
    %20 = vector.load %arg7[%c0_17, %c0_18] : memref<1x128xf32, #tpu.memory_space<vmem>>, vector<1x128xf32>
    %21 = vector.broadcast %20 : vector<1x128xf32> to vector<16x128xf32>
    %22 = arith.addf %19, %21 : vector<16x128xf32>
    %c0_19 = arith.constant 0 : index
    %c0_20 = arith.constant 0 : index
    %23 = vector.load %arg8[%c0_19, %c0_20] : memref<16x128xf32, #tpu.memory_space<vmem>>, vector<16x128xf32>
    tpu.vector_store %arg8[%c0_19, %c0_20], %22 {strides = array<i32>} : memref<16x128xf32, #tpu.memory_space<vmem>>, vector<16x128xf32>,
    return
  }
  func.func @transform_0(%arg0: i32) -> (i32, i32) {
    %c0_i32 = arith.constant 0 : i32
    %c0_i32_0 = arith.constant 0 : i32
    return %arg0, %c0_i32 : i32, i32
  }
  func.func @transform_1(%arg0: i32) -> (i32, i32) {
    %c0_i32 = arith.constant 0 : i32
    %c0_i32_0 = arith.constant 0 : i32
    %c0_i32_1 = arith.constant 0 : i32
    return %c0_i32, %c0_i32_0 : i32, i32
  }
  func.func @transform_2(%arg0: i32) -> (i32, i32) {
    %c0_i32 = arith.constant 0 : i32
    %c0_i32_0 = arith.constant 0 : i32
    %c0_i32_1 = arith.constant 0 : i32
    return %c0_i32, %c0_i32_0 : i32, i32
  }
  func.func @transform_3(%arg0: i32) -> (i32, i32) {
    %c0_i32 = arith.constant 0 : i32
    %c0_i32_0 = arith.constant 0 : i32
    %c0_i32_1 = arith.constant 0 : i32
    return %c0_i32, %c0_i32_0 : i32, i32
  }
  func.func @transform_4(%arg0: i32) -> (i32, i32) {
    %c0_i32 = arith.constant 0 : i32
    %c0_i32_0 = arith.constant 0 : i32
    %c0_i32_1 = arith.constant 0 : i32
    return %c0_i32, %c0_i32_0 : i32, i32
  }
  func.func @transform_5(%arg0: i32) -> (i32, i32) {
    %c0_i32 = arith.constant 0 : i32
    %c0_i32_0 = arith.constant 0 : i32
    %c0_i32_1 = arith.constant 0 : i32
    return %c0_i32, %c0_i32_0 : i32, i32
  }
  func.func @transform_6(%arg0: i32) -> (i32, i32) {
    %c0_i32 = arith.constant 0 : i32
    %c0_i32_0 = arith.constant 0 : i32
    %c0_i32_1 = arith.constant 0 : i32
    return %c0_i32, %c0_i32_0 : i32, i32
  }
  func.func @transform_7(%arg0: i32) -> (i32, i32) {
    %c0_i32 = arith.constant 0 : i32
    %c0_i32_0 = arith.constant 0 : i32
    return %arg0, %c0_i32 : i32, i32
  }
  func.func @transform_8(%arg0: i32) -> (i32, i32) {
    %c0_i32 = arith.constant 0 : i32
    %c0_i32_0 = arith.constant 0 : i32
    return %arg0, %c0_i32 : i32, i32
  }
}

</mosaic_0001>

<llo_original>
// kernel: _fc_classifier_forward_impl.1
$region0: #{_fc_classifier_forward_impl.1}
  #allocation0 [shape = 'u32[]', space=smem, size = 0x4, offset = 0x4, fixed_abs, tag = 'smem constant byte address 0x4 - core index']
  #allocation1 [shape = 'u32[72,128]{1,0:T(1,128)}', space=vmem, size = 0x9000, scoped, tag = 'internal scratch']
  %s0 = inlined_call_operand.vmem [shape: bf16[16,128], index: 0, kind: input, shape index: {}]
  %s1 = inlined_call_operand.vmem [shape: bf16[128,128], index: 1, kind: input, shape index: {}]
  %s2 = inlined_call_operand.vmem [shape: f32[1,128], index: 2, kind: input, shape index: {}]
  %s3 = inlined_call_operand.vmem [shape: bf16[128,128], index: 3, kind: input, shape index: {}]
  %s4 = inlined_call_operand.vmem [shape: f32[1,128], index: 4, kind: input, shape index: {}]
  %s5 = inlined_call_operand.vmem [shape: bf16[128,128], index: 5, kind: input, shape index: {}]
  %s6 = inlined_call_operand.vmem [shape: f32[1,128], index: 6, kind: input, shape index: {}]
  %s7 = inlined_call_operand.vmem [shape: f32[16,128], index: 7, kind: output, shape index: {0}]
  %s8 = inlined_call_operand.vmem [shape: bf16[16,128], index: 8, kind: output, shape index: {1}]
  %9 = xla_tuple %s7, %s8
  %s10 = sld [smem:[#allocation0]]
  $region46: #{_fc_classifier_forward_impl.1} parent=0
    _
  %s12 = ssub.s32 1, %s10
  %s13 = scalar_select 0, %s12, %s10
  // Predicated region
  $region2: #{_fc_classifier_forward_impl.1} parent=0 // pred_check
    _
  $region3: #{_fc_classifier_forward_impl.1} parent=0 // pred_check_branch
    %15 = sbr.rel (0) target = $region5
  $region4: #{_fc_classifier_forward_impl.1} parent=0 // pred_region
    _
  $region5: #{_fc_classifier_forward_impl.1} parent=0 // pred_fallthru
    _
  // Predicated region
  $region6: #{_fc_classifier_forward_impl.1} parent=0 // pred_check
    _
  $region7: #{_fc_classifier_forward_impl.1} parent=0 // pred_check_branch
    %17 = sbr.rel (0) target = $region9
  $region8: #{_fc_classifier_forward_impl.1} parent=0 // pred_region
    _
  $region9: #{_fc_classifier_forward_impl.1} parent=0 // pred_fallthru
    _
  // Predicated region
  $region10: #{_fc_classifier_forward_impl.1} parent=0 // pred_check
    _
  $region11: #{_fc_classifier_forward_impl.1} parent=0 // pred_check_branch
    %19 = sbr.rel (0) target = $region13
  $region12: #{_fc_classifier_forward_impl.1} parent=0 // pred_region
    _
  $region13: #{_fc_classifier_forward_impl.1} parent=0 // pred_fallthru
    _
  // Predicated region
  $region14: #{_fc_classifier_forward_impl.1} parent=0 // pred_check
    _
  $region15: #{_fc_classifier_forward_impl.1} parent=0 // pred_check_branch
    %21 = sbr.rel (0) target = $region17
  $region16: #{_fc_classifier_forward_impl.1} parent=0 // pred_region
    _
  $region17: #{_fc_classifier_forward_impl.1} parent=0 // pred_fallthru
    _
  // Predicated region
  $region18: #{_fc_classifier_forward_impl.1} parent=0 // pred_check
    _
  $region19: #{_fc_classifier_forward_impl.1} parent=0 // pred_check_branch
    %23 = sbr.rel (0) target = $region21
  $region20: #{_fc_classifier_forward_impl.1} parent=0 // pred_region
    _
  $region21: #{_fc_classifier_forward_impl.1} parent=0 // pred_fallthru
    _
  // Predicated region
  $region22: #{_fc_classifier_forward_impl.1} parent=0 // pred_check
    _
  $region23: #{_fc_classifier_forward_impl.1} parent=0 // pred_check_branch
    %25 = sbr.rel (0) target = $region25
  $region24: #{_fc_classifier_forward_impl.1} parent=0 // pred_region
    _
  $region25: #{_fc_classifier_forward_impl.1} parent=0 // pred_fallthru
    _
  // Predicated region
  $region26: #{_fc_classifier_forward_impl.1} parent=0 // pred_check
    _
  $region27: #{_fc_classifier_forward_impl.1} parent=0 // pred_check_branch
    %27 = sbr.rel (0) target = $region29
  $region28: #{_fc_classifier_forward_impl.1} parent=0 // pred_region
    _
  $region29: #{_fc_classifier_forward_impl.1} parent=0 // pred_fallthru
    _
  %v28 = vld [vmem:[%s0] sm:$0xf]
  %v29 = vld [vmem:[%s0 + $0x4] sm:$0xf]
  %v30 = vld [vmem:[%s1] sm:$0xf]
  %v31 = vld [vmem:[%s1 + $0x4] sm:$0xf]
  %v32 = vld [vmem:[%s1 + $0x8] sm:$0xf]
  %v33 = vld [vmem:[%s1 + $0xc] sm:$0xf]
  %v34 = vld [vmem:[%s1 + $0x10] sm:$0xf]
  %v35 = vld [vmem:[%s1 + $0x14] sm:$0xf]
  %v36 = vld [vmem:[%s1 + $0x18] sm:$0xf]
  %v37 = vld [vmem:[%s1 + $0x1c] sm:$0xf]
  %v38 = vld [vmem:[%s1 + $0x20] sm:$0xf]
  %v39 = vld [vmem:[%s1 + $0x24] sm:$0xf]
  %v40 = vld [vmem:[%s1 + $0x28] sm:$0xf]
  %v41 = vld [vmem:[%s1 + $0x2c] sm:$0xf]
  %v42 = vld [vmem:[%s1 + $0x30] sm:$0xf]
  %v43 = vld [vmem:[%s1 + $0x34] sm:$0xf]
  %v44 = vld [vmem:[%s1 + $0x38] sm:$0xf]
  %v45 = vld [vmem:[%s1 + $0x3c] sm:$0xf]
  %v46 = vld [vmem:[%s2] sm:$0x1]
  %v48 = vperm.slane %v46, 0
  %v52 = vunpack.c.l.b16 %v28
  %v53 = vunpack.c.l.b16 %v29
  %v54 = vpack.c.b16 %v53, %v52
  %v72 = vunpack.c.l.b16 %v30
  %v73 = vunpack.c.l.b16 %v31
  %v74 = vunpack.c.l.b16 %v32
  %v75 = vunpack.c.l.b16 %v33
  %v76 = vunpack.c.l.b16 %v34
  %v77 = vunpack.c.l.b16 %v35
  %v78 = vunpack.c.l.b16 %v36
  %v79 = vunpack.c.l.b16 %v37
  %v80 = vunpack.c.l.b16 %v38
  %v81 = vunpack.c.l.b16 %v39
  %v82 = vunpack.c.l.b16 %v40
  %v83 = vunpack.c.l.b16 %v41
  %v84 = vunpack.c.l.b16 %v42
  %v85 = vunpack.c.l.b16 %v43
  %v86 = vunpack.c.l.b16 %v44
  %v87 = vunpack.c.l.b16 %v45
  %v88 = vpack.c.b16 %v73, %v72
  %v89 = vpack.c.b16 %v75, %v74
  %v90 = vpack.c.b16 %v77, %v76
  %v91 = vpack.c.b16 %v79, %v78
  %v92 = vpack.c.b16 %v81, %v80
  %v93 = vpack.c.b16 %v83, %v82
  %v94 = vpack.c.b16 %v85, %v84
  %v95 = vpack.c.b16 %v87, %v86
  %104 = vmatpush.bf16.msra.mxu0 %v95
  %105 = vmatpush.bf16.msra.mxu0 %v94
  %106 = vmatpush.bf16.msra.mxu0 %v93
  %107 = vmatpush.bf16.msra.mxu0 %v92
  %108 = vmatpush.bf16.msra.mxu0 %v91
  %109 = vmatpush.bf16.msra.mxu0 %v90
  %110 = vmatpush.bf16.msra.mxu0 %v89
  %111 = vmatpush.bf16.msra.mxu0 %v88
  %112 = vmatmul.bf16.gmra.mxu0 %v54
  %v113 = vpop.f32.mrf.mxu0
  %v114 = vadd.f32 %v48, %v113
  %v115 = vpop.f32.mrf.mxu0
  %v116 = vadd.f32 %v48, %v115
  %117 = vdwg.mxu0
  %v118 = vmax.f32 %v114, 0.0
  %v119 = vmax.f32 %v116, 0.0
  %v120 = vpack.c.bf16 %v119, %v118
  %v121 = vld [vmem:[%s3] sm:$0xf]
  %v122 = vld [vmem:[%s3 + $0x4] sm:$0xf]
  %v123 = vld [vmem:[%s3 + $0x8] sm:$0xf]
  %v124 = vld [vmem:[%s3 + $0xc] sm:$0xf]
  %v125 = vld [vmem:[%s3 + $0x10] sm:$0xf]
  %v126 = vld [vmem:[%s3 + $0x14] sm:$0xf]
  %v127 = vld [vmem:[%s3 + $0x18] sm:$0xf]
  %v128 = vld [vmem:[%s3 + $0x1c] sm:$0xf]
  %v129 = vld [vmem:[%s3 + $0x20] sm:$0xf]
  %v130 = vld [vmem:[%s3 + $0x24] sm:$0xf]
  %v131 = vld [vmem:[%s3 + $0x28] sm:$0xf]
  %v132 = vld [vmem:[%s3 + $0x2c] sm:$0xf]
  %v133 = vld [vmem:[%s3 + $0x30] sm:$0xf]
  %v134 = vld [vmem:[%s3 + $0x34] sm:$0xf]
  %v135 = vld [vmem:[%s3 + $0x38] sm:$0xf]
  %v136 = vld [vmem:[%s3 + $0x3c] sm:$0xf]
  %v137 = vld [vmem:[%s4] sm:$0x1]
  %v139 = vperm.slane %v137, 0
  %v157 = vunpack.c.l.b16 %v121
  %v158 = vunpack.c.l.b16 %v122
  %v159 = vunpack.c.l.b16 %v123
  %v160 = vunpack.c.l.b16 %v124
  %v161 = vunpack.c.l.b16 %v125
  %v162 = vunpack.c.l.b16 %v126
  %v163 = vunpack.c.l.b16 %v127
  %v164 = vunpack.c.l.b16 %v128
  %v165 = vunpack.c.l.b16 %v129
  %v166 = vunpack.c.l.b16 %v130
  %v167 = vunpack.c.l.b16 %v131
  %v168 = vunpack.c.l.b16 %v132
  %v169 = vunpack.c.l.b16 %v133
  %v170 = vunpack.c.l.b16 %v134
  %v171 = vunpack.c.l.b16 %v135
  %v172 = vunpack.c.l.b16 %v136
  %v173 = vpack.c.b16 %v158, %v157
  %v174 = vpack.c.b16 %v160, %v159
  %v175 = vpack.c.b16 %v162, %v161
  %v176 = vpack.c.b16 %v164, %v163
  %v177 = vpack.c.b16 %v166, %v165
  %v178 = vpack.c.b16 %v168, %v167
  %v179 = vpack.c.b16 %v170, %v169
  %v180 = vpack.c.b16 %v172, %v171
  %189 = vmatpush.bf16.msra.mxu0 %v180
  %190 = vmatpush.bf16.msra.mxu0 %v179
  %191 = vmatpush.bf16.msra.mxu0 %v178
  %192 = vmatpush.bf16.msra.mxu0 %v177
  %193 = vmatpush.bf16.msra.mxu0 %v176
  %194 = vmatpush.bf16.msra.mxu0 %v175
  %195 = vmatpush.bf16.msra.mxu0 %v174
  %196 = vmatpush.bf16.msra.mxu0 %v173
  %197 = vmatmul.bf16.gmra.mxu0 %v120
  %v198 = vpop.f32.mrf.mxu0
  %v199 = vadd.f32 %v139, %v198
  %v200 = vpop.f32.mrf.mxu0
  %v201 = vadd.f32 %v139, %v200
  %202 = vdwg.mxu0
  %v203 = vmax.f32 %v199, 0.0
  %v204 = vmax.f32 %v201, 0.0
  %v205 = vpack.c.bf16 %v203, %v203
  %v206 = vpack.c.bf16 %v204, %v204
  %207 = vst [vmem:[%s8] sm:$0xf] %v205
  %208 = vst [vmem:[%s8 + $0x4] sm:$0xf] %v206
  %v209 = vld [vmem:[%s5] sm:$0xf]
  %v210 = vld [vmem:[%s5 + $0x4] sm:$0xf]
  %v211 = vld [vmem:[%s5 + $0x8] sm:$0xf]
  %v212 = vld [vmem:[%s5 + $0xc] sm:$0xf]
  %v213 = vld [vmem:[%s5 + $0x10] sm:$0xf]
  %v214 = vld [vmem:[%s5 + $0x14] sm:$0xf]
  %v215 = vld [vmem:[%s5 + $0x18] sm:$0xf]
  %v216 = vld [vmem:[%s5 + $0x1c] sm:$0xf]
  %v217 = vld [vmem:[%s5 + $0x20] sm:$0xf]
  %v218 = vld [vmem:[%s5 + $0x24] sm:$0xf]
  %v219 = vld [vmem:[%s5 + $0x28] sm:$0xf]
  %v220 = vld [vmem:[%s5 + $0x2c] sm:$0xf]
  %v221 = vld [vmem:[%s5 + $0x30] sm:$0xf]
  %v222 = vld [vmem:[%s5 + $0x34] sm:$0xf]
  %v223 = vld [vmem:[%s5 + $0x38] sm:$0xf]
  %v224 = vld [vmem:[%s5 + $0x3c] sm:$0xf]
  %v225 = vld [vmem:[%s6] sm:$0x1]
  %v227 = vperm.slane %v225, 0
  %v231 = vunpack.c.l.b16 %v205
  %v232 = vunpack.c.l.b16 %v206
  %v233 = vpack.c.b16 %v232, %v231
  %v251 = vunpack.c.l.b16 %v209
  %v252 = vunpack.c.l.b16 %v210
  %v253 = vunpack.c.l.b16 %v211
  %v254 = vunpack.c.l.b16 %v212
  %v255 = vunpack.c.l.b16 %v213
  %v256 = vunpack.c.l.b16 %v214
  %v257 = vunpack.c.l.b16 %v215
  %v258 = vunpack.c.l.b16 %v216
  %v259 = vunpack.c.l.b16 %v217
  %v260 = vunpack.c.l.b16 %v218
  %v261 = vunpack.c.l.b16 %v219
  %v262 = vunpack.c.l.b16 %v220
  %v263 = vunpack.c.l.b16 %v221
  %v264 = vunpack.c.l.b16 %v222
  %v265 = vunpack.c.l.b16 %v223
  %v266 = vunpack.c.l.b16 %v224
  %v267 = vpack.c.b16 %v252, %v251
  %v268 = vpack.c.b16 %v254, %v253
  %v269 = vpack.c.b16 %v256, %v255
  %v270 = vpack.c.b16 %v258, %v257
  %v271 = vpack.c.b16 %v260, %v259
  %v272 = vpack.c.b16 %v262, %v261
  %v273 = vpack.c.b16 %v264, %v263
  %v274 = vpack.c.b16 %v266, %v265
  %283 = vmatpush.bf16.msra.mxu0 %v274
  %284 = vmatpush.bf16.msra.mxu0 %v273
  %285 = vmatpush.bf16.msra.mxu0 %v272
  %286 = vmatpush.bf16.msra.mxu0 %v271
  %287 = vmatpush.bf16.msra.mxu0 %v270
  %288 = vmatpush.bf16.msra.mxu0 %v269
  %289 = vmatpush.bf16.msra.mxu0 %v268
  %290 = vmatpush.bf16.msra.mxu0 %v267
  %291 = vmatmul.bf16.gmra.mxu0 %v233
  %v292 = vpop.f32.mrf.mxu0
  %v293 = vadd.f32 %v227, %v292
  %v294 = vpop.f32.mrf.mxu0
  %v295 = vadd.f32 %v227, %v294
  %296 = vdwg.mxu0
  %297 = vst [vmem:[%s7] sm:$0xff] %v293
  %298 = vst [vmem:[%s7 + $0x8] sm:$0xff] %v295
  // Predicated region
  $region30: #{_fc_classifier_forward_impl.1} parent=0 // pred_check
    _
  $region31: #{_fc_classifier_forward_impl.1} parent=0 // pred_check_branch
    %300 = sbr.rel (0) target = $region33
  $region32: #{_fc_classifier_forward_impl.1} parent=0 // pred_region
    _
  $region33: #{_fc_classifier_forward_impl.1} parent=0 // pred_fallthru
    _
  // Predicated region
  $region34: #{_fc_classifier_forward_impl.1} parent=0 // pred_check
    _
  $region35: #{_fc_classifier_forward_impl.1} parent=0 // pred_check_branch
    %302 = sbr.rel (0) target = $region37
  $region36: #{_fc_classifier_forward_impl.1} parent=0 // pred_region
    _
  $region37: #{_fc_classifier_forward_impl.1} parent=0 // pred_fallthru
    _
  // Predicated region
  $region38: #{_fc_classifier_forward_impl.1} parent=0 // pred_check
    _
  $region39: #{_fc_classifier_forward_impl.1} parent=0 // pred_check_branch
    %304 = sbr.rel (0) target = $region41
  $region40: #{_fc_classifier_forward_impl.1} parent=0 // pred_region
    _
  $region41: #{_fc_classifier_forward_impl.1} parent=0 // pred_fallthru
    _
  // Predicated region
  $region42: #{_fc_classifier_forward_impl.1} parent=0 // pred_check
    _
  $region43: #{_fc_classifier_forward_impl.1} parent=0 // pred_check_branch
    %306 = sbr.rel (0) target = $region45
  $region44: #{_fc_classifier_forward_impl.1} parent=0 // pred_region
    _
  $region45: #{_fc_classifier_forward_impl.1} parent=0 // pred_fallthru
    _

// kernel: _fc_classifier_forward_impl.1
$region0: #{_fc_classifier_forward_impl.1}
  #allocation0 [shape = 'u32[]', space=smem, size = 0x4, offset = 0x4, fixed_abs, tag = 'smem constant byte address 0x4 - core index']
  #allocation1 [shape = 'u32[72,128]{1,0:T(1,128)}', space=vmem, size = 0x9000, scoped, tag = 'internal scratch']
  %s0 = inlined_call_operand.vmem [shape: bf16[16,128], index: 0, kind: input, shape index: {}]
  %s1 = inlined_call_operand.vmem [shape: bf16[128,128], index: 1, kind: input, shape index: {}]
  %s2 = inlined_call_operand.vmem [shape: f32[1,128], index: 2, kind: input, shape index: {}]
  %s3 = inlined_call_operand.vmem [shape: bf16[128,128], index: 3, kind: input, shape index: {}]
  %s4 = inlined_call_operand.vmem [shape: f32[1,128], index: 4, kind: input, shape index: {}]
  %s5 = inlined_call_operand.vmem [shape: bf16[128,128], index: 5, kind: input, shape index: {}]
  %s6 = inlined_call_operand.vmem [shape: f32[1,128], index: 6, kind: input, shape index: {}]
  %s7 = inlined_call_operand.vmem [shape: f32[16,128], index: 7, kind: output, shape index: {0}]
  %s8 = inlined_call_operand.vmem [shape: bf16[16,128], index: 8, kind: output, shape index: {1}]
  %9 = xla_tuple %s7, %s8
  %s10 = sld [smem:[#allocation0]]
  $region46: #{_fc_classifier_forward_impl.1} parent=0
    _
  %s12 = ssub.s32 1, %s10
  %s13 = scalar_select 0, %s12, %s10
  // Predicated region
  $region2: #{_fc_classifier_forward_impl.1} parent=0 // pred_check
    _
  $region3: #{_fc_classifier_forward_impl.1} parent=0 // pred_check_branch
    %15 = sbr.rel (0) target = $region5
  $region4: #{_fc_classifier_forward_impl.1} parent=0 // pred_region
    _
  $region5: #{_fc_classifier_forward_impl.1} parent=0 // pred_fallthru
    _
  // Predicated region
  $region6: #{_fc_classifier_forward_impl.1} parent=0 // pred_check
    _
  $region7: #{_fc_classifier_forward_impl.1} parent=0 // pred_check_branch
    %17 = sbr.rel (0) target = $region9
  $region8: #{_fc_classifier_forward_impl.1} parent=0 // pred_region
    _
  $region9: #{_fc_classifier_forward_impl.1} parent=0 // pred_fallthru
    _
  // Predicated region
  $region10: #{_fc_classifier_forward_impl.1} parent=0 // pred_check
    _
  $region11: #{_fc_classifier_forward_impl.1} parent=0 // pred_check_branch
    %19 = sbr.rel (0) target = $region13
  $region12: #{_fc_classifier_forward_impl.1} parent=0 // pred_region
    _
  $region13: #{_fc_classifier_forward_impl.1} parent=0 // pred_fallthru
    _
  // Predicated region
  $region14: #{_fc_classifier_forward_impl.1} parent=0 // pred_check
    _
  $region15: #{_fc_classifier_forward_impl.1} parent=0 // pred_check_branch
    %21 = sbr.rel (0) target = $region17
  $region16: #{_fc_classifier_forward_impl.1} parent=0 // pred_region
    _
  $region17: #{_fc_classifier_forward_impl.1} parent=0 // pred_fallthru
    _
  // Predicated region
  $region18: #{_fc_classifier_forward_impl.1} parent=0 // pred_check
    _
  $region19: #{_fc_classifier_forward_impl.1} parent=0 // pred_check_branch
    %23 = sbr.rel (0) target = $region21
  $region20: #{_fc_classifier_forward_impl.1} parent=0 // pred_region
    _
  $region21: #{_fc_classifier_forward_impl.1} parent=0 // pred_fallthru
    _
  // Predicated region
  $region22: #{_fc_classifier_forward_impl.1} parent=0 // pred_check
    _
  $region23: #{_fc_classifier_forward_impl.1} parent=0 // pred_check_branch
    %25 = sbr.rel (0) target = $region25
  $region24: #{_fc_classifier_forward_impl.1} parent=0 // pred_region
    _
  $region25: #{_fc_classifier_forward_impl.1} parent=0 // pred_fallthru
    _
  // Predicated region
  $region26: #{_fc_classifier_forward_impl.1} parent=0 // pred_check
    _
  $region27: #{_fc_classifier_forward_impl.1} parent=0 // pred_check_branch
    %27 = sbr.rel (0) target = $region29
  $region28: #{_fc_classifier_forward_impl.1} parent=0 // pred_region
    _
  $region29: #{_fc_classifier_forward_impl.1} parent=0 // pred_fallthru
    _
  %v28 = vld [vmem:[%s0] sm:$0xf]
  %v29 = vld [vmem:[%s0 + $0x4] sm:$0xf]
  %v30 = vld [vmem:[%s1] sm:$0xf]
  %v31 = vld [vmem:[%s1 + $0x4] sm:$0xf]
  %v32 = vld [vmem:[%s1 + $0x8] sm:$0xf]
  %v33 = vld [vmem:[%s1 + $0xc] sm:$0xf]
  %v34 = vld [vmem:[%s1 + $0x10] sm:$0xf]
  %v35 = vld [vmem:[%s1 + $0x14] sm:$0xf]
  %v36 = vld [vmem:[%s1 + $0x18] sm:$0xf]
  %v37 = vld [vmem:[%s1 + $0x1c] sm:$0xf]
  %v38 = vld [vmem:[%s1 + $0x20] sm:$0xf]
  %v39 = vld [vmem:[%s1 + $0x24] sm:$0xf]
  %v40 = vld [vmem:[%s1 + $0x28] sm:$0xf]
  %v41 = vld [vmem:[%s1 + $0x2c] sm:$0xf]
  %v42 = vld [vmem:[%s1 + $0x30] sm:$0xf]
  %v43 = vld [vmem:[%s1 + $0x34] sm:$0xf]
  %v44 = vld [vmem:[%s1 + $0x38] sm:$0xf]
  %v45 = vld [vmem:[%s1 + $0x3c] sm:$0xf]
  %v46 = vld [vmem:[%s2] sm:$0x1]
  %v48 = vperm.slane %v46, 0
  %v52 = vunpack.c.l.b16 %v28
  %v53 = vunpack.c.l.b16 %v29
  %v54 = vpack.c.b16 %v53, %v52
  %v72 = vunpack.c.l.b16 %v30
  %v73 = vunpack.c.l.b16 %v31
  %v74 = vunpack.c.l.b16 %v32
  %v75 = vunpack.c.l.b16 %v33
  %v76 = vunpack.c.l.b16 %v34
  %v77 = vunpack.c.l.b16 %v35
  %v78 = vunpack.c.l.b16 %v36
  %v79 = vunpack.c.l.b16 %v37
  %v80 = vunpack.c.l.b16 %v38
  %v81 = vunpack.c.l.b16 %v39
  %v82 = vunpack.c.l.b16 %v40
  %v83 = vunpack.c.l.b16 %v41
  %v84 = vunpack.c.l.b16 %v42
  %v85 = vunpack.c.l.b16 %v43
  %v86 = vunpack.c.l.b16 %v44
  %v87 = vunpack.c.l.b16 %v45
  %v88 = vpack.c.b16 %v73, %v72
  %v89 = vpack.c.b16 %v75, %v74
  %v90 = vpack.c.b16 %v77, %v76
  %v91 = vpack.c.b16 %v79, %v78
  %v92 = vpack.c.b16 %v81, %v80
  %v93 = vpack.c.b16 %v83, %v82
  %v94 = vpack.c.b16 %v85, %v84
  %v95 = vpack.c.b16 %v87, %v86
  %104 = vmatpush.bf16.msra.mxu0 %v95
  %105 = vmatpush.bf16.msra.mxu0 %v94
  %106 = vmatpush.bf16.msra.mxu0 %v93
  %107 = vmatpush.bf16.msra.mxu0 %v92
  %108 = vmatpush.bf16.msra.mxu0 %v91
  %109 = vmatpush.bf16.msra.mxu0 %v90
  %110 = vmatpush.bf16.msra.mxu0 %v89
  %111 = vmatpush.bf16.msra.mxu0 %v88
  %112 = vmatmul.bf16.gmra.mxu0 %v54
  %v113 = vpop.f32.mrf.mxu0
  %v114 = vadd.f32 %v48, %v113
  %v115 = vpop.f32.mrf.mxu0
  %v116 = vadd.f32 %v48, %v115
  %117 = vdwg.mxu0
  %v118 = vmax.f32 %v114, 0.0
  %v119 = vmax.f32 %v116, 0.0
  %v120 = vpack.c.bf16 %v119, %v118
  %v121 = vld [vmem:[%s3] sm:$0xf]
  %v122 = vld [vmem:[%s3 + $0x4] sm:$0xf]
  %v123 = vld [vmem:[%s3 + $0x8] sm:$0xf]
  %v124 = vld [vmem:[%s3 + $0xc] sm:$0xf]
  %v125 = vld [vmem:[%s3 + $0x10] sm:$0xf]
  %v126 = vld [vmem:[%s3 + $0x14] sm:$0xf]
  %v127 = vld [vmem:[%s3 + $0x18] sm:$0xf]
  %v128 = vld [vmem:[%s3 + $0x1c] sm:$0xf]
  %v129 = vld [vmem:[%s3 + $0x20] sm:$0xf]
  %v130 = vld [vmem:[%s3 + $0x24] sm:$0xf]
  %v131 = vld [vmem:[%s3 + $0x28] sm:$0xf]
  %v132 = vld [vmem:[%s3 + $0x2c] sm:$0xf]
  %v133 = vld [vmem:[%s3 + $0x30] sm:$0xf]
  %v134 = vld [vmem:[%s3 + $0x34] sm:$0xf]
  %v135 = vld [vmem:[%s3 + $0x38] sm:$0xf]
  %v136 = vld [vmem:[%s3 + $0x3c] sm:$0xf]
  %v137 = vld [vmem:[%s4] sm:$0x1]
  %v139 = vperm.slane %v137, 0
  %v157 = vunpack.c.l.b16 %v121
  %v158 = vunpack.c.l.b16 %v122
  %v159 = vunpack.c.l.b16 %v123
  %v160 = vunpack.c.l.b16 %v124
  %v161 = vunpack.c.l.b16 %v125
  %v162 = vunpack.c.l.b16 %v126
  %v163 = vunpack.c.l.b16 %v127
  %v164 = vunpack.c.l.b16 %v128
  %v165 = vunpack.c.l.b16 %v129
  %v166 = vunpack.c.l.b16 %v130
  %v167 = vunpack.c.l.b16 %v131
  %v168 = vunpack.c.l.b16 %v132
  %v169 = vunpack.c.l.b16 %v133
  %v170 = vunpack.c.l.b16 %v134
  %v171 = vunpack.c.l.b16 %v135
  %v172 = vunpack.c.l.b16 %v136
  %v173 = vpack.c.b16 %v158, %v157
  %v174 = vpack.c.b16 %v160, %v159
  %v175 = vpack.c.b16 %v162, %v161
  %v176 = vpack.c.b16 %v164, %v163
  %v177 = vpack.c.b16 %v166, %v165
  %v178 = vpack.c.b16 %v168, %v167
  %v179 = vpack.c.b16 %v170, %v169
  %v180 = vpack.c.b16 %v172, %v171
  %189 = vmatpush.bf16.msra.mxu0 %v180
  %190 = vmatpush.bf16.msra.mxu0 %v179
  %191 = vmatpush.bf16.msra.mxu0 %v178
  %192 = vmatpush.bf16.msra.mxu0 %v177
  %193 = vmatpush.bf16.msra.mxu0 %v176
  %194 = vmatpush.bf16.msra.mxu0 %v175
  %195 = vmatpush.bf16.msra.mxu0 %v174
  %196 = vmatpush.bf16.msra.mxu0 %v173
  %197 = vmatmul.bf16.gmra.mxu0 %v120
  %v198 = vpop.f32.mrf.mxu0
  %v199 = vadd.f32 %v139, %v198
  %v200 = vpop.f32.mrf.mxu0
  %v201 = vadd.f32 %v139, %v200
  %202 = vdwg.mxu0
  %v203 = vmax.f32 %v199, 0.0
  %v204 = vmax.f32 %v201, 0.0
  %v205 = vpack.c.bf16 %v203, %v203
  %v206 = vpack.c.bf16 %v204, %v204
  %207 = vst [vmem:[%s8] sm:$0xf] %v205
  %208 = vst [vmem:[%s8 + $0x4] sm:$0xf] %v206
  %v209 = vld [vmem:[%s5] sm:$0xf]
  %v210 = vld [vmem:[%s5 + $0x4] sm:$0xf]
  %v211 = vld [vmem:[%s5 + $0x8] sm:$0xf]
  %v212 = vld [vmem:[%s5 + $0xc] sm:$0xf]
  %v213 = vld [vmem:[%s5 + $0x10] sm:$0xf]
  %v214 = vld [vmem:[%s5 + $0x14] sm:$0xf]
  %v215 = vld [vmem:[%s5 + $0x18] sm:$0xf]
  %v216 = vld [vmem:[%s5 + $0x1c] sm:$0xf]
  %v217 = vld [vmem:[%s5 + $0x20] sm:$0xf]
  %v218 = vld [vmem:[%s5 + $0x24] sm:$0xf]
  %v219 = vld [vmem:[%s5 + $0x28] sm:$0xf]
  %v220 = vld [vmem:[%s5 + $0x2c] sm:$0xf]
  %v221 = vld [vmem:[%s5 + $0x30] sm:$0xf]
  %v222 = vld [vmem:[%s5 + $0x34] sm:$0xf]
  %v223 = vld [vmem:[%s5 + $0x38] sm:$0xf]
  %v224 = vld [vmem:[%s5 + $0x3c] sm:$0xf]
  %v225 = vld [vmem:[%s6] sm:$0x1]
  %v227 = vperm.slane %v225, 0
  %v231 = vunpack.c.l.b16 %v205
  %v232 = vunpack.c.l.b16 %v206
  %v233 = vpack.c.b16 %v232, %v231
  %v251 = vunpack.c.l.b16 %v209
  %v252 = vunpack.c.l.b16 %v210
  %v253 = vunpack.c.l.b16 %v211
  %v254 = vunpack.c.l.b16 %v212
  %v255 = vunpack.c.l.b16 %v213
  %v256 = vunpack.c.l.b16 %v214
  %v257 = vunpack.c.l.b16 %v215
  %v258 = vunpack.c.l.b16 %v216
  %v259 = vunpack.c.l.b16 %v217
  %v260 = vunpack.c.l.b16 %v218
  %v261 = vunpack.c.l.b16 %v219
  %v262 = vunpack.c.l.b16 %v220
  %v263 = vunpack.c.l.b16 %v221
  %v264 = vunpack.c.l.b16 %v222
  %v265 = vunpack.c.l.b16 %v223
  %v266 = vunpack.c.l.b16 %v224
  %v267 = vpack.c.b16 %v252, %v251
  %v268 = vpack.c.b16 %v254, %v253
  %v269 = vpack.c.b16 %v256, %v255
  %v270 = vpack.c.b16 %v258, %v257
  %v271 = vpack.c.b16 %v260, %v259
  %v272 = vpack.c.b16 %v262, %v261
  %v273 = vpack.c.b16 %v264, %v263
  %v274 = vpack.c.b16 %v266, %v265
  %283 = vmatpush.bf16.msra.mxu0 %v274
  %284 = vmatpush.bf16.msra.mxu0 %v273
  %285 = vmatpush.bf16.msra.mxu0 %v272
  %286 = vmatpush.bf16.msra.mxu0 %v271
  %287 = vmatpush.bf16.msra.mxu0 %v270
  %288 = vmatpush.bf16.msra.mxu0 %v269
  %289 = vmatpush.bf16.msra.mxu0 %v268
  %290 = vmatpush.bf16.msra.mxu0 %v267
  %291 = vmatmul.bf16.gmra.mxu0 %v233
  %v292 = vpop.f32.mrf.mxu0
  %v293 = vadd.f32 %v227, %v292
  %v294 = vpop.f32.mrf.mxu0
  %v295 = vadd.f32 %v227, %v294
  %296 = vdwg.mxu0
  %297 = vst [vmem:[%s7] sm:$0xff] %v293
  %298 = vst [vmem:[%s7 + $0x8] sm:$0xff] %v295
  // Predicated region
  $region30: #{_fc_classifier_forward_impl.1} parent=0 // pred_check
    _
  $region31: #{_fc_classifier_forward_impl.1} parent=0 // pred_check_branch
    %300 = sbr.rel (0) target = $region33
  $region32: #{_fc_classifier_forward_impl.1} parent=0 // pred_region
    _
  $region33: #{_fc_classifier_forward_impl.1} parent=0 // pred_fallthru
    _
  // Predicated region
  $region34: #{_fc_classifier_forward_impl.1} parent=0 // pred_check
    _
  $region35: #{_fc_classifier_forward_impl.1} parent=0 // pred_check_branch
    %302 = sbr.rel (0) target = $region37
  $region36: #{_fc_classifier_forward_impl.1} parent=0 // pred_region
    _
  $region37: #{_fc_classifier_forward_impl.1} parent=0 // pred_fallthru
    _
  // Predicated region
  $region38: #{_fc_classifier_forward_impl.1} parent=0 // pred_check
    _
  $region39: #{_fc_classifier_forward_impl.1} parent=0 // pred_check_branch
    %304 = sbr.rel (0) target = $region41
  $region40: #{_fc_classifier_forward_impl.1} parent=0 // pred_region
    _
  $region41: #{_fc_classifier_forward_impl.1} parent=0 // pred_fallthru
    _
  // Predicated region
  $region42: #{_fc_classifier_forward_impl.1} parent=0 // pred_check
    _
  $region43: #{_fc_classifier_forward_impl.1} parent=0 // pred_check_branch
    %306 = sbr.rel (0) target = $region45
  $region44: #{_fc_classifier_forward_impl.1} parent=0 // pred_region
    _
  $region45: #{_fc_classifier_forward_impl.1} parent=0 // pred_fallthru
    _

</llo_original>
